<compile_context>
chip_gen: v7x
topology: tpu7x:2x2x1
jax: 0.10.0
libtpu: 0.0.40
codegen_flags: <defaults>
</compile_context>

<pallas_src>
import jax
import jax.numpy as jnp
from jax import lax
from jax.experimental import pallas as pl
from jax.experimental.pallas import tpu as pltpu

HIDDEN = 16
INPUT_SIZE = 1


def rnn_fc_kernel(x_ref, h0_ref, p_ref, wp_ref, bfc_ref, out_ref, hn_ref):
    """Fused Elman-RNN (tanh) + Linear head, FC folded into the recurrent matmul.

    x_ref   : (S, Bp, 1)   time-major input (batch padded to multiple of 8)
    h0_ref  : (Bp, H)      initial hidden state
    p_ref   : (8, H)       packed small params: row 0 = W_ih^T, row 1 = b_ih+b_hh
    wp_ref  : (H, H+1)     [W_hh^T | W_fc^T]  (augmented recurrent matrix)
    bfc_ref : (1,)         fc bias (SMEM scalar)
    out_ref : (Bp, 128)    lane-dense per-(batch, step) fc output; col s = y_s
    hn_ref  : (Bp, H)      final hidden state (aliased with h0 in HBM)
    """
    S = x_ref.shape[0]
    H = hn_ref.shape[-1]
    Bp = hn_ref.shape[0]
    out_w = out_ref.shape[1]

    wih_t = p_ref[0:1, :]           # (1, H)  W_ih^T
    b = p_ref[1:2, :]               # (1, H)  b_ih + b_hh
    wp = wp_ref[...]                # (H, H+1)

    # Hoisted input contribution for every timestep:
    # (S, Bp, 1) * (1, H) + (1, H) -> (S, Bp, H).
    # VPU work that hides under the per-step MXU latency (kept in-kernel on
    # purpose; moving it to the wrapper would be a separate un-hidden XLA op).
    xwb = x_ref[...] * wih_t + b

    # Serial recurrence, fully unrolled (S small & static).  h stays in vregs;
    # each step's augmented matmul also yields fc(h_{t-1}) in column H.
    h = h0_ref[...]                 # (Bp, H)
    ys = []
    for t in range(S):              # static indices -> no dynamic slicing
        z = jnp.dot(h, wp, preferred_element_type=jnp.float32)   # (Bp, H+1)
        if t > 0:
            ys.append(z[:, H:])     # fc(h_{t-1}) without bias, shape (Bp, 1)
        h = jnp.tanh(xwb[t] + z[:, :H])

    hn_ref[...] = h

    # Last step's fc output: one more ride on the augmented matmul.
    ys.append(jnp.dot(h, wp, preferred_element_type=jnp.float32)[:, H:])

    # Lane-dense store: columns 0..S-1 hold y_s, the rest is padding.
    cols = ys + [jnp.zeros((Bp, out_w - S), jnp.float32)]
    out_ref[...] = jnp.concatenate(cols, axis=1) + bfc_ref[0]


@jax.jit
def net_forward(x, h, params):
    """x: (B, S, 1) float32 batch-first, h: (1, B, H) float32.

    Returns (out, hidden_prev) with out (1, B*S, 1), hidden_prev (1, B, H),
    matching the PyTorch forward exactly.
    """
    B, S, _ = x.shape
    H = h.shape[-1]
    Bp = ((B + 7) // 8) * 8                       # pad batch to 8-sublane multiple
    out_w = max(128, ((S + 127) // 128) * 128)    # lane-dense output width

    x_tm = jnp.transpose(x, (1, 0, 2)).astype(jnp.float32)           # (S, B, 1)
    x_tm = jnp.pad(x_tm, ((0, 0), (0, Bp - B), (0, 0)))              # (S, Bp, 1)
    h0 = jnp.pad(h[0].astype(jnp.float32), ((0, Bp - B), (0, 0)))    # (Bp, H)

    # Pack the tiny row params into one (8, H) array (one DMA instead of many).
    packed = jnp.concatenate(
        [params["w_ih"].reshape(1, H),
         (params["b_ih"] + params["b_hh"]).reshape(1, H),
         jnp.zeros((6, H), jnp.float32)], axis=0)                    # (8, H)

    # Augmented recurrent matrix: [W_hh^T | W_fc^T].
    wp = jnp.concatenate(
        [params["w_hh"].T, params["w_fc"].reshape(H, 1)], axis=1)    # (H, H+1)
    bfc = params["b_fc"].reshape(1).astype(jnp.float32)              # (1,)

    vmem = pl.BlockSpec(memory_space=pltpu.MemorySpace.VMEM)
    smem = pl.BlockSpec(memory_space=pltpu.MemorySpace.SMEM)

    flops = 2 * (S + 1) * Bp * H * (H + 1) + 4 * S * Bp * H
    transcendentals = S * Bp * H
    bytes_accessed = 4 * (S * Bp + Bp * H + 8 * H + H * (H + 1) + 1
                          + Bp * out_w + Bp * H)

    out_lane, h_n = pl.pallas_call(
        rnn_fc_kernel,
        out_shape=(
            jax.ShapeDtypeStruct((Bp, out_w), jnp.float32),
            jax.ShapeDtypeStruct((Bp, H), jnp.float32),
        ),
        in_specs=[vmem, vmem, vmem, vmem, smem],
        out_specs=(vmem, vmem),
        input_output_aliases={1: 1},              # h0 -> h_n (same HBM buffer)
        cost_estimate=pl.CostEstimate(
            flops=flops, transcendentals=transcendentals,
            bytes_accessed=bytes_accessed),
    )(x_tm, h0, packed, wp, bfc)

    # PyTorch: out.view(-1, 16) flattens batch-first (B, S, H) -> row b*S + s,
    # then fc -> (B*S, 1), then unsqueeze(0).  Kernel output is already
    # batch-major, so only a slice + reshape is needed here.
    out = out_lane[:B, :S].reshape(B * S, 1)[None]                   # (1, B*S, 1)
    hidden_prev = h_n[:B][None]                                      # (1, B, H)
    return out, hidden_prev


def init_params(key, hidden=HIDDEN, input_size=INPUT_SIZE):
    """Deterministic init mimicking PyTorch's uniform(-1/sqrt(H), 1/sqrt(H))."""
    k = jax.random.split(key, 6)
    bound = 1.0 / jnp.sqrt(jnp.float32(hidden))
    u = lambda kk, shape: jax.random.uniform(
        kk, shape, dtype=jnp.float32, minval=-bound, maxval=bound)
    return {
        "w_ih": u(k[0], (hidden, input_size)),   # (H, 1)
        "w_hh": u(k[1], (hidden, hidden)),       # (H, H)
        "b_ih": u(k[2], (hidden,)),
        "b_hh": u(k[3], (hidden,)),
        "w_fc": u(k[4], (1, hidden)),            # (1, H)
        "b_fc": u(k[5], (1,)),
    }


def net_forward_ref(x, h, params):
    """Pure-JAX reference of the PyTorch forward (for correctness check)."""
    B, S, _ = x.shape
    H = h.shape[-1]

    def step(h_prev, x_t):  # x_t: (B, 1), h_prev: (B, H)
        h_new = jnp.tanh(
            x_t @ params["w_ih"].T + h_prev @ params["w_hh"].T
            + params["b_ih"] + params["b_hh"])
        return h_new, h_new

    h_n, outs = lax.scan(step, h[0], jnp.transpose(x, (1, 0, 2)))   # (S, B, H)
    outs = jnp.transpose(outs, (1, 0, 2)).reshape(-1, H)            # (B*S, H)
    y = outs @ params["w_fc"].T + params["b_fc"]                    # (B*S, 1)
    return y[None], h_n[None]


if __name__ == "__main__":
    B, S, H = 3, 8, HIDDEN
    key = jax.random.PRNGKey(0)
    k_x, k_h, k_p = jax.random.split(key, 3)

    x = jax.random.normal(k_x, (B, S, INPUT_SIZE), dtype=jnp.float32)
    h0 = jax.random.normal(k_h, (1, B, H), dtype=jnp.float32)
    params = init_params(k_p)

    out, hidden_prev = jax.block_until_ready(net_forward(x, h0, params))
    out_ref, hidden_ref = net_forward_ref(x, h0, params)

    assert out.shape == (1, B * S, 1), out.shape
    assert hidden_prev.shape == (1, B, H), hidden_prev.shape
    assert jnp.allclose(out, out_ref, atol=1e-5, rtol=1e-5)
    assert jnp.allclose(hidden_prev, hidden_ref, atol=1e-5, rtol=1e-5)

    print("KERNEL_OK")
</pallas_src>

<mosaic_0001>
module attributes {stable_mosaic.version = 11 : i64} {
  func.func @rnn_fc_kernel(%arg0: memref<8x8x1xf32, #tpu.memory_space<vmem>>, %arg1: memref<8x16xf32, #tpu.memory_space<vmem>>, %arg2: memref<8x16xf32, #tpu.memory_space<vmem>>, %arg3: memref<16x17xf32, #tpu.memory_space<vmem>>, %arg4: memref<1xf32, #tpu.memory_space<smem>>, %arg5: memref<8x128xf32, #tpu.memory_space<vmem>>, %arg6: memref<8x16xf32, #tpu.memory_space<vmem>>) attributes {dimension_semantics = [], scalar_prefetch = 0 : i64, scratch_operands = 0 : i64, tpu.core_type = #tpu.core_type<tc>} {
    %c0 = arith.constant 0 : index
    %c0_0 = arith.constant 0 : index
    %0 = vector.load %arg2[%c0, %c0_0] : memref<8x16xf32, #tpu.memory_space<vmem>>, vector<1x16xf32>
    %c1 = arith.constant 1 : index
    %c0_1 = arith.constant 0 : index
    %1 = vector.load %arg2[%c1, %c0_1] : memref<8x16xf32, #tpu.memory_space<vmem>>, vector<1x16xf32>
    %c0_2 = arith.constant 0 : index
    %c0_3 = arith.constant 0 : index
    %2 = vector.load %arg3[%c0_2, %c0_3] : memref<16x17xf32, #tpu.memory_space<vmem>>, vector<16x17xf32>
    %c0_4 = arith.constant 0 : index
    %c0_5 = arith.constant 0 : index
    %c0_6 = arith.constant 0 : index
    %3 = vector.load %arg0[%c0_4, %c0_5, %c0_6] : memref<8x8x1xf32, #tpu.memory_space<vmem>>, vector<8x8x1xf32>
    %4 = vector.shape_cast %0 : vector<1x16xf32> to vector<1x1x16xf32>
    %5 = vector.broadcast %3 : vector<8x8x1xf32> to vector<8x8x16xf32>
    %6 = vector.broadcast %4 : vector<1x1x16xf32> to vector<8x8x16xf32>
    %7 = arith.mulf %5, %6 : vector<8x8x16xf32>
    %8 = vector.shape_cast %1 : vector<1x16xf32> to vector<1x1x16xf32>
    %9 = vector.broadcast %8 : vector<1x1x16xf32> to vector<8x8x16xf32>
    %10 = arith.addf %7, %9 : vector<8x8x16xf32>
    %c0_7 = arith.constant 0 : index
    %c0_8 = arith.constant 0 : index
    %11 = vector.load %arg1[%c0_7, %c0_8] : memref<8x16xf32, #tpu.memory_space<vmem>>, vector<8x16xf32>
    %cst = arith.constant dense<0.000000e+00> : vector<8x17xf32>
    %12 = tpu.matmul %11, %2, %cst {dimension_numbers = #tpu.dot_dimension_numbers<[1], [0], [0], [1], [0, 0, 1, 1], [], []>} : vector<8x16xf32>, vector<16x17xf32>, vector<8x17xf32> -> vector<8x17xf32>
    %13 = vector.extract_strided_slice %10 {offsets = [0, 0, 0], sizes = [1, 8, 16], strides = [1, 1, 1]} : vector<8x8x16xf32> to vector<1x8x16xf32>
    %14 = vector.shape_cast %13 : vector<1x8x16xf32> to vector<8x16xf32>
    %15 = vector.extract_strided_slice %12 {offsets = [0, 0], sizes = [8, 16], strides = [1, 1]} : vector<8x17xf32> to vector<8x16xf32>
    %16 = arith.addf %14, %15 : vector<8x16xf32>
    %17 = math.tanh %16 : vector<8x16xf32>
    %cst_9 = arith.constant dense<0.000000e+00> : vector<8x17xf32>
    %18 = tpu.matmul %17, %2, %cst_9 {dimension_numbers = #tpu.dot_dimension_numbers<[1], [0], [0], [1], [0, 0, 1, 1], [], []>} : vector<8x16xf32>, vector<16x17xf32>, vector<8x17xf32> -> vector<8x17xf32>
    %19 = vector.extract_strided_slice %18 {offsets = [0, 16], sizes = [8, 1], strides = [1, 1]} : vector<8x17xf32> to vector<8x1xf32>
    %20 = vector.extract_strided_slice %10 {offsets = [1, 0, 0], sizes = [1, 8, 16], strides = [1, 1, 1]} : vector<8x8x16xf32> to vector<1x8x16xf32>
    %21 = vector.shape_cast %20 : vector<1x8x16xf32> to vector<8x16xf32>
    %22 = vector.extract_strided_slice %18 {offsets = [0, 0], sizes = [8, 16], strides = [1, 1]} : vector<8x17xf32> to vector<8x16xf32>
    %23 = arith.addf %21, %22 : vector<8x16xf32>
    %24 = math.tanh %23 : vector<8x16xf32>
    %cst_10 = arith.constant dense<0.000000e+00> : vector<8x17xf32>
    %25 = tpu.matmul %24, %2, %cst_10 {dimension_numbers = #tpu.dot_dimension_numbers<[1], [0], [0], [1], [0, 0, 1, 1], [], []>} : vector<8x16xf32>, vector<16x17xf32>, vector<8x17xf32> -> vector<8x17xf32>
    %26 = vector.extract_strided_slice %25 {offsets = [0, 16], sizes = [8, 1], strides = [1, 1]} : vector<8x17xf32> to vector<8x1xf32>
    %27 = vector.extract_strided_slice %10 {offsets = [2, 0, 0], sizes = [1, 8, 16], strides = [1, 1, 1]} : vector<8x8x16xf32> to vector<1x8x16xf32>
    %28 = vector.shape_cast %27 : vector<1x8x16xf32> to vector<8x16xf32>
    %29 = vector.extract_strided_slice %25 {offsets = [0, 0], sizes = [8, 16], strides = [1, 1]} : vector<8x17xf32> to vector<8x16xf32>
    %30 = arith.addf %28, %29 : vector<8x16xf32>
    %31 = math.tanh %30 : vector<8x16xf32>
    %cst_11 = arith.constant dense<0.000000e+00> : vector<8x17xf32>
    %32 = tpu.matmul %31, %2, %cst_11 {dimension_numbers = #tpu.dot_dimension_numbers<[1], [0], [0], [1], [0, 0, 1, 1], [], []>} : vector<8x16xf32>, vector<16x17xf32>, vector<8x17xf32> -> vector<8x17xf32>
    %33 = vector.extract_strided_slice %32 {offsets = [0, 16], sizes = [8, 1], strides = [1, 1]} : vector<8x17xf32> to vector<8x1xf32>
    %34 = vector.extract_strided_slice %10 {offsets = [3, 0, 0], sizes = [1, 8, 16], strides = [1, 1, 1]} : vector<8x8x16xf32> to vector<1x8x16xf32>
    %35 = vector.shape_cast %34 : vector<1x8x16xf32> to vector<8x16xf32>
    %36 = vector.extract_strided_slice %32 {offsets = [0, 0], sizes = [8, 16], strides = [1, 1]} : vector<8x17xf32> to vector<8x16xf32>
    %37 = arith.addf %35, %36 : vector<8x16xf32>
    %38 = math.tanh %37 : vector<8x16xf32>
    %cst_12 = arith.constant dense<0.000000e+00> : vector<8x17xf32>
    %39 = tpu.matmul %38, %2, %cst_12 {dimension_numbers = #tpu.dot_dimension_numbers<[1], [0], [0], [1], [0, 0, 1, 1], [], []>} : vector<8x16xf32>, vector<16x17xf32>, vector<8x17xf32> -> vector<8x17xf32>
    %40 = vector.extract_strided_slice %39 {offsets = [0, 16], sizes = [8, 1], strides = [1, 1]} : vector<8x17xf32> to vector<8x1xf32>
    %41 = vector.extract_strided_slice %10 {offsets = [4, 0, 0], sizes = [1, 8, 16], strides = [1, 1, 1]} : vector<8x8x16xf32> to vector<1x8x16xf32>
    %42 = vector.shape_cast %41 : vector<1x8x16xf32> to vector<8x16xf32>
    %43 = vector.extract_strided_slice %39 {offsets = [0, 0], sizes = [8, 16], strides = [1, 1]} : vector<8x17xf32> to vector<8x16xf32>
    %44 = arith.addf %42, %43 : vector<8x16xf32>
    %45 = math.tanh %44 : vector<8x16xf32>
    %cst_13 = arith.constant dense<0.000000e+00> : vector<8x17xf32>
    %46 = tpu.matmul %45, %2, %cst_13 {dimension_numbers = #tpu.dot_dimension_numbers<[1], [0], [0], [1], [0, 0, 1, 1], [], []>} : vector<8x16xf32>, vector<16x17xf32>, vector<8x17xf32> -> vector<8x17xf32>
    %47 = vector.extract_strided_slice %46 {offsets = [0, 16], sizes = [8, 1], strides = [1, 1]} : vector<8x17xf32> to vector<8x1xf32>
    %48 = vector.extract_strided_slice %10 {offsets = [5, 0, 0], sizes = [1, 8, 16], strides = [1, 1, 1]} : vector<8x8x16xf32> to vector<1x8x16xf32>
    %49 = vector.shape_cast %48 : vector<1x8x16xf32> to vector<8x16xf32>
    %50 = vector.extract_strided_slice %46 {offsets = [0, 0], sizes = [8, 16], strides = [1, 1]} : vector<8x17xf32> to vector<8x16xf32>
    %51 = arith.addf %49, %50 : vector<8x16xf32>
    %52 = math.tanh %51 : vector<8x16xf32>
    %cst_14 = arith.constant dense<0.000000e+00> : vector<8x17xf32>
    %53 = tpu.matmul %52, %2, %cst_14 {dimension_numbers = #tpu.dot_dimension_numbers<[1], [0], [0], [1], [0, 0, 1, 1], [], []>} : vector<8x16xf32>, vector<16x17xf32>, vector<8x17xf32> -> vector<8x17xf32>
    %54 = vector.extract_strided_slice %53 {offsets = [0, 16], sizes = [8, 1], strides = [1, 1]} : vector<8x17xf32> to vector<8x1xf32>
    %55 = vector.extract_strided_slice %10 {offsets = [6, 0, 0], sizes = [1, 8, 16], strides = [1, 1, 1]} : vector<8x8x16xf32> to vector<1x8x16xf32>
    %56 = vector.shape_cast %55 : vector<1x8x16xf32> to vector<8x16xf32>
    %57 = vector.extract_strided_slice %53 {offsets = [0, 0], sizes = [8, 16], strides = [1, 1]} : vector<8x17xf32> to vector<8x16xf32>
    %58 = arith.addf %56, %57 : vector<8x16xf32>
    %59 = math.tanh %58 : vector<8x16xf32>
    %cst_15 = arith.constant dense<0.000000e+00> : vector<8x17xf32>
    %60 = tpu.matmul %59, %2, %cst_15 {dimension_numbers = #tpu.dot_dimension_numbers<[1], [0], [0], [1], [0, 0, 1, 1], [], []>} : vector<8x16xf32>, vector<16x17xf32>, vector<8x17xf32> -> vector<8x17xf32>
    %61 = vector.extract_strided_slice %60 {offsets = [0, 16], sizes = [8, 1], strides = [1, 1]} : vector<8x17xf32> to vector<8x1xf32>
    %62 = vector.extract_strided_slice %10 {offsets = [7, 0, 0], sizes = [1, 8, 16], strides = [1, 1, 1]} : vector<8x8x16xf32> to vector<1x8x16xf32>
    %63 = vector.shape_cast %62 : vector<1x8x16xf32> to vector<8x16xf32>
    %64 = vector.extract_strided_slice %60 {offsets = [0, 0], sizes = [8, 16], strides = [1, 1]} : vector<8x17xf32> to vector<8x16xf32>
    %65 = arith.addf %63, %64 : vector<8x16xf32>
    %66 = math.tanh %65 : vector<8x16xf32>
    %c0_16 = arith.constant 0 : index
    %c0_17 = arith.constant 0 : index
    %67 = vector.load %arg6[%c0_16, %c0_17] : memref<8x16xf32, #tpu.memory_space<vmem>>, vector<8x16xf32>
    tpu.vector_store %arg6[%c0_16, %c0_17], %66 {strides = array<i32>} : memref<8x16xf32, #tpu.memory_space<vmem>>, vector<8x16xf32>,
    %cst_18 = arith.constant dense<0.000000e+00> : vector<8x17xf32>
    %68 = tpu.matmul %66, %2, %cst_18 {dimension_numbers = #tpu.dot_dimension_numbers<[1], [0], [0], [1], [0, 0, 1, 1], [], []>} : vector<8x16xf32>, vector<16x17xf32>, vector<8x17xf32> -> vector<8x17xf32>
    %69 = vector.extract_strided_slice %68 {offsets = [0, 16], sizes = [8, 1], strides = [1, 1]} : vector<8x17xf32> to vector<8x1xf32>
    %cst_19 = arith.constant 0.000000e+00 : f32
    %70 = vector.broadcast %cst_19 : f32 to vector<8x120xf32>
    %71 = tpu.concatenate %19, %26, %33, %40, %47, %54, %61, %69, %70 in 1 : vector<8x1xf32>, vector<8x1xf32>, vector<8x1xf32>, vector<8x1xf32>, vector<8x1xf32>, vector<8x1xf32>, vector<8x1xf32>, vector<8x1xf32>, vector<8x120xf32> -> vector<8x128xf32>
    %c0_20 = arith.constant 0 : index
    %72 = memref.load %arg4[%c0_20] : memref<1xf32, #tpu.memory_space<smem>>
    %73 = vector.broadcast %72 : f32 to vector<8x128xf32>
    %74 = arith.addf %71, %73 : vector<8x128xf32>
    %c0_21 = arith.constant 0 : index
    %c0_22 = arith.constant 0 : index
    %75 = vector.load %arg5[%c0_21, %c0_22] : memref<8x128xf32, #tpu.memory_space<vmem>>, vector<8x128xf32>
    tpu.vector_store %arg5[%c0_21, %c0_22], %74 {strides = array<i32>} : memref<8x128xf32, #tpu.memory_space<vmem>>, vector<8x128xf32>,
    return
  }
}

</mosaic_0001>

<llo_original>
// kernel: net_forward.1
$region0: #{net_forward.1}
  #allocation0 [shape = 'u32[]', space=smem, size = 0x4, offset = 0x4, fixed_abs, tag = 'smem constant byte address 0x4 - core index']
  #allocation1 [shape = 'u32[144,128]{1,0:T(1,128)}', space=vmem, size = 0x12000, scoped, tag = 'internal scratch']
  #allocation2 [shape = 'f32[1]{0:T(128)S(6)}', space=smem, size = 0x200, scoped, tag = 'scoped memory for net_forward.1']
  %s0 = inlined_call_operand.vmem [shape: f32[8,8,1], index: 0, kind: input, shape index: {}]
  %s1 = inlined_call_operand.vmem [shape: f32[8,16], index: 1, kind: input, shape index: {}, may-alias: {1,6}]
  %s2 = inlined_call_operand.vmem [shape: f32[8,16], index: 2, kind: input, shape index: {}]
  %s3 = inlined_call_operand.vmem [shape: f32[16,17], index: 3, kind: input, shape index: {}]
  %s4 = inlined_call_operand.<no memory space> [shape: f32[1], index: 4, kind: input, shape index: {}]
  %s5 = inlined_call_operand.vmem [shape: f32[8,128], index: 5, kind: output, shape index: {0}]
  %s6 = inlined_call_operand.vmem [shape: f32[8,16], index: 6, kind: output, shape index: {1}, may-alias: {1,6}]
  %7 = xla_tuple %s5, %s6
  %s8 = sld [smem:[#allocation0]]
  $region38: #{net_forward.1} parent=0
    _
  %s10 = ssub.s32 1, %s8
  %s11 = scalar_select 0, %s10, %s8
  %12 = sst [smem:[#allocation2]] %s4
  // Predicated region
  $region2: #{net_forward.1} parent=0 // pred_check
    _
  $region3: #{net_forward.1} parent=0 // pred_check_branch
    %14 = sbr.rel (0) target = $region5
  $region4: #{net_forward.1} parent=0 // pred_region
    _
  $region5: #{net_forward.1} parent=0 // pred_fallthru
    _
  // Predicated region
  $region6: #{net_forward.1} parent=0 // pred_check
    _
  $region7: #{net_forward.1} parent=0 // pred_check_branch
    %16 = sbr.rel (0) target = $region9
  $region8: #{net_forward.1} parent=0 // pred_region
    _
  $region9: #{net_forward.1} parent=0 // pred_fallthru
    _
  // Predicated region
  $region10: #{net_forward.1} parent=0 // pred_check
    _
  $region11: #{net_forward.1} parent=0 // pred_check_branch
    %18 = sbr.rel (0) target = $region13
  $region12: #{net_forward.1} parent=0 // pred_region
    _
  $region13: #{net_forward.1} parent=0 // pred_fallthru
    _
  // Predicated region
  $region14: #{net_forward.1} parent=0 // pred_check
    _
  $region15: #{net_forward.1} parent=0 // pred_check_branch
    %20 = sbr.rel (0) target = $region17
  $region16: #{net_forward.1} parent=0 // pred_region
    _
  $region17: #{net_forward.1} parent=0 // pred_fallthru
    _
  // Predicated region
  $region18: #{net_forward.1} parent=0 // pred_check
    _
  $region19: #{net_forward.1} parent=0 // pred_check_branch
    %22 = sbr.rel (0) target = $region21
  $region20: #{net_forward.1} parent=0 // pred_region
    _
  $region21: #{net_forward.1} parent=0 // pred_fallthru
    _
  %v23 = vld [vmem:[%s2] sm:$0x1]
  %v24 = vld [vmem:[%s2 + $0x1] sm:$0x1]
  %v25 = vld [vmem:[%s3] sm:$0xff]
  %v26 = vld [vmem:[%s3 + $0x8] sm:$0xff]
  %v27 = vld [vmem:[%s0] sm:$0xff]
  %v28 = vld [vmem:[%s0 + $0x8] sm:$0xff]
  %v29 = vld [vmem:[%s0 + $0x10] sm:$0xff]
  %v30 = vld [vmem:[%s0 + $0x18] sm:$0xff]
  %v31 = vld [vmem:[%s0 + $0x20] sm:$0xff]
  %v32 = vld [vmem:[%s0 + $0x28] sm:$0xff]
  %v33 = vld [vmem:[%s0 + $0x30] sm:$0xff]
  %v34 = vld [vmem:[%s0 + $0x38] sm:$0xff]
  %36 = vset.pattern.permute.xlu0 0
  %37 = vperm.xlu0 %36, %v27
  %v38 = vpop.permute.xlu0 %37
  %41 = vset.pattern.permute.xlu0 0
  %42 = vperm.xlu0 %41, %v28
  %v43 = vpop.permute.xlu0 %42
  %46 = vset.pattern.permute.xlu0 0
  %47 = vperm.xlu0 %46, %v29
  %v48 = vpop.permute.xlu0 %47
  %51 = vset.pattern.permute.xlu0 0
  %52 = vperm.xlu0 %51, %v30
  %v53 = vpop.permute.xlu0 %52
  %56 = vset.pattern.permute.xlu0 0
  %57 = vperm.xlu0 %56, %v31
  %v58 = vpop.permute.xlu0 %57
  %61 = vset.pattern.permute.xlu0 0
  %62 = vperm.xlu0 %61, %v32
  %v63 = vpop.permute.xlu0 %62
  %66 = vset.pattern.permute.xlu0 0
  %67 = vperm.xlu0 %66, %v33
  %v68 = vpop.permute.xlu0 %67
  %71 = vset.pattern.permute.xlu0 0
  %72 = vperm.xlu0 %71, %v34
  %v73 = vpop.permute.xlu0 %72
  %v75 = vlaneseq
  %v76 = vshrl.u32 %v75, 7
  %v77 = vsub.s32 0, %v76
  %v78 = vrot.slane %v23, %v77
  %v79 = vmul.f32 %v38, %v78
  %v80 = vmul.f32 %v43, %v78
  %v81 = vmul.f32 %v48, %v78
  %v82 = vmul.f32 %v53, %v78
  %v83 = vmul.f32 %v58, %v78
  %v84 = vmul.f32 %v63, %v78
  %v85 = vmul.f32 %v68, %v78
  %v86 = vmul.f32 %v73, %v78
  %v87 = vlaneseq
  %v88 = vshrl.u32 %v87, 7
  %v89 = vsub.s32 0, %v88
  %v90 = vrot.slane %v24, %v89
  %v91 = vadd.f32 %v79, %v90
  %v92 = vadd.f32 %v80, %v90
  %v93 = vadd.f32 %v81, %v90
  %v94 = vadd.f32 %v82, %v90
  %v95 = vadd.f32 %v83, %v90
  %v96 = vadd.f32 %v84, %v90
  %v97 = vadd.f32 %v85, %v90
  %v98 = vadd.f32 %v86, %v90
  %v99 = vld [vmem:[%s1] sm:$0xff]
  %vm100 = vcmask 130048
  %v102 = vsel %vm100, %v99, 0
  %104 = vmatprep.subr.mxu0 0.0
  %105 = vmatpush1.msra.mxu0 %v25
  %106 = vmatprep.subr.mxu0 0.0
  %107 = vmatpush1.msra.mxu0 %v26
  %108 = vmatprep.subr.mxu0 0.0
  %109 = vmatpush1.msra.mxu0 0.0
  %110 = vmatprep.subr.mxu0 0.0
  %111 = vmatpush1.msra.mxu0 0.0
  %112 = vmatprep.subr.mxu0 0.0
  %113 = vmatpush1.msra.mxu0 0.0
  %114 = vmatprep.subr.mxu0 0.0
  %115 = vmatpush1.msra.mxu0 0.0
  %116 = vmatprep.subr.mxu0 0.0
  %117 = vmatpush1.msra.mxu0 0.0
  %118 = vmatprep.subr.mxu0 0.0
  %119 = vmatpush1.msra.mxu0 0.0
  %120 = vmatprep.subr.mxu0 0.0
  %121 = vmatpush1.msra.mxu0 0.0
  %122 = vmatprep.subr.mxu0 0.0
  %123 = vmatpush1.msra.mxu0 0.0
  %124 = vmatprep.subr.mxu0 0.0
  %125 = vmatpush1.msra.mxu0 0.0
  %126 = vmatprep.subr.mxu0 0.0
  %127 = vmatpush1.msra.mxu0 0.0
  %128 = vmatprep.subr.mxu0 0.0
  %129 = vmatpush1.msra.mxu0 0.0
  %130 = vmatprep.subr.mxu0 0.0
  %131 = vmatpush1.msra.mxu0 0.0
  %132 = vmatprep.subr.mxu0 0.0
  %133 = vmatpush1.msra.mxu0 0.0
  %134 = vmatprep.subr.mxu0 0.0
  %135 = vmatpush1.msra.mxu0 0.0
  %136 = vmatprep.subr.mxu0 0.0
  %137 = vmatpush1.msra.mxu0 0.0
  %138 = vmatprep.subr.mxu0 0.0
  %139 = vmatpush1.msra.mxu0 0.0
  %140 = vmatprep.subr.mxu0 0.0
  %141 = vmatpush1.msra.mxu0 0.0
  %142 = vmatprep.subr.mxu0 0.0
  %143 = vmatpush1.msra.mxu0 0.0
  %144 = vmatprep.subr.mxu0 0.0
  %145 = vmatpush1.msra.mxu0 0.0
  %146 = vmatprep.subr.mxu0 0.0
  %147 = vmatpush1.msra.mxu0 0.0
  %148 = vmatprep.subr.mxu0 0.0
  %149 = vmatpush1.msra.mxu0 0.0
  %150 = vmatprep.subr.mxu0 0.0
  %151 = vmatpush1.msra.mxu0 0.0
  %152 = vmatprep.subr.mxu0 0.0
  %153 = vmatpush1.msra.mxu0 0.0
  %154 = vmatprep.subr.mxu0 0.0
  %155 = vmatpush1.msra.mxu0 0.0
  %156 = vmatprep.subr.mxu0 0.0
  %157 = vmatpush1.msra.mxu0 0.0
  %158 = vmatprep.subr.mxu0 0.0
  %159 = vmatpush1.msra.mxu0 0.0
  %160 = vmatprep.subr.mxu0 0.0
  %161 = vmatpush1.msra.mxu0 0.0
  %162 = vmatprep.subr.mxu0 0.0
  %163 = vmatpush1.msra.mxu0 0.0
  %164 = vmatprep.subr.mxu0 0.0
  %165 = vmatpush1.msra.mxu0 0.0
  %166 = vmatprep.subr.mxu0 0.0
  %167 = vmatpush1.msra.mxu0 0.0
  %168 = vmatprep.mubr.f32.mxu0 0.0
  %169 = vmatmul.mubr.f32.gmra.mrb[0].mxu0 %v102
  %v170 = vpop.f32.mrb[0].mxu0
  %v171 = vadd.f32 0.0, %v170
  %v172 = vpop.f32.mrb[0].mxu0
  %173 = vdwg.mxu0
  %v174 = vadd.f32 %v91, %v171
  %v175 = vtanh.pop %v174
  %v177 = vsel %vm100, %v175, 0
  %179 = vmatprep.subr.mxu0 0.0
  %180 = vmatpush1.msra.mxu0 %v25
  %181 = vmatprep.subr.mxu0 0.0
  %182 = vmatpush1.msra.mxu0 %v26
  %183 = vmatprep.subr.mxu0 0.0
  %184 = vmatpush1.msra.mxu0 0.0
  %185 = vmatprep.subr.mxu0 0.0
  %186 = vmatpush1.msra.mxu0 0.0
  %187 = vmatprep.subr.mxu0 0.0
  %188 = vmatpush1.msra.mxu0 0.0
  %189 = vmatprep.subr.mxu0 0.0
  %190 = vmatpush1.msra.mxu0 0.0
  %191 = vmatprep.subr.mxu0 0.0
  %192 = vmatpush1.msra.mxu0 0.0
  %193 = vmatprep.subr.mxu0 0.0
  %194 = vmatpush1.msra.mxu0 0.0
  %195 = vmatprep.subr.mxu0 0.0
  %196 = vmatpush1.msra.mxu0 0.0
  %197 = vmatprep.subr.mxu0 0.0
  %198 = vmatpush1.msra.mxu0 0.0
  %199 = vmatprep.subr.mxu0 0.0
  %200 = vmatpush1.msra.mxu0 0.0
  %201 = vmatprep.subr.mxu0 0.0
  %202 = vmatpush1.msra.mxu0 0.0
  %203 = vmatprep.subr.mxu0 0.0
  %204 = vmatpush1.msra.mxu0 0.0
  %205 = vmatprep.subr.mxu0 0.0
  %206 = vmatpush1.msra.mxu0 0.0
  %207 = vmatprep.subr.mxu0 0.0
  %208 = vmatpush1.msra.mxu0 0.0
  %209 = vmatprep.subr.mxu0 0.0
  %210 = vmatpush1.msra.mxu0 0.0
  %211 = vmatprep.subr.mxu0 0.0
  %212 = vmatpush1.msra.mxu0 0.0
  %213 = vmatprep.subr.mxu0 0.0
  %214 = vmatpush1.msra.mxu0 0.0
  %215 = vmatprep.subr.mxu0 0.0
  %216 = vmatpush1.msra.mxu0 0.0
  %217 = vmatprep.subr.mxu0 0.0
  %218 = vmatpush1.msra.mxu0 0.0
  %219 = vmatprep.subr.mxu0 0.0
  %220 = vmatpush1.msra.mxu0 0.0
  %221 = vmatprep.subr.mxu0 0.0
  %222 = vmatpush1.msra.mxu0 0.0
  %223 = vmatprep.subr.mxu0 0.0
  %224 = vmatpush1.msra.mxu0 0.0
  %225 = vmatprep.subr.mxu0 0.0
  %226 = vmatpush1.msra.mxu0 0.0
  %227 = vmatprep.subr.mxu0 0.0
  %228 = vmatpush1.msra.mxu0 0.0
  %229 = vmatprep.subr.mxu0 0.0
  %230 = vmatpush1.msra.mxu0 0.0
  %231 = vmatprep.subr.mxu0 0.0
  %232 = vmatpush1.msra.mxu0 0.0
  %233 = vmatprep.subr.mxu0 0.0
  %234 = vmatpush1.msra.mxu0 0.0
  %235 = vmatprep.subr.mxu0 0.0
  %236 = vmatpush1.msra.mxu0 0.0
  %237 = vmatprep.subr.mxu0 0.0
  %238 = vmatpush1.msra.mxu0 0.0
  %239 = vmatprep.subr.mxu0 0.0
  %240 = vmatpush1.msra.mxu0 0.0
  %241 = vmatprep.subr.mxu0 0.0
  %242 = vmatpush1.msra.mxu0 0.0
  %243 = vmatprep.mubr.f32.mxu0 0.0
  %244 = vmatmul.mubr.f32.gmra.mrb[0].mxu0 %v177
  %v245 = vpop.f32.mrb[0].mxu0
  %v246 = vadd.f32 0.0, %v245
  %v247 = vpop.f32.mrb[0].mxu0
  %248 = vdwg.mxu0
  %v249 = vadd.f32 %v92, %v246
  %v250 = vtanh.pop %v249
  %v252 = vsel %vm100, %v250, 0
  %254 = vmatprep.subr.mxu0 0.0
  %255 = vmatpush1.msra.mxu0 %v25
  %256 = vmatprep.subr.mxu0 0.0
  %257 = vmatpush1.msra.mxu0 %v26
  %258 = vmatprep.subr.mxu0 0.0
  %259 = vmatpush1.msra.mxu0 0.0
  %260 = vmatprep.subr.mxu0 0.0
  %261 = vmatpush1.msra.mxu0 0.0
  %262 = vmatprep.subr.mxu0 0.0
  %263 = vmatpush1.msra.mxu0 0.0
  %264 = vmatprep.subr.mxu0 0.0
  %265 = vmatpush1.msra.mxu0 0.0
  %266 = vmatprep.subr.mxu0 0.0
  %267 = vmatpush1.msra.mxu0 0.0
  %268 = vmatprep.subr.mxu0 0.0
  %269 = vmatpush1.msra.mxu0 0.0
  %270 = vmatprep.subr.mxu0 0.0
  %271 = vmatpush1.msra.mxu0 0.0
  %272 = vmatprep.subr.mxu0 0.0
  %273 = vmatpush1.msra.mxu0 0.0
  %274 = vmatprep.subr.mxu0 0.0
  %275 = vmatpush1.msra.mxu0 0.0
  %276 = vmatprep.subr.mxu0 0.0
  %277 = vmatpush1.msra.mxu0 0.0
  %278 = vmatprep.subr.mxu0 0.0
  %279 = vmatpush1.msra.mxu0 0.0
  %280 = vmatprep.subr.mxu0 0.0
  %281 = vmatpush1.msra.mxu0 0.0
  %282 = vmatprep.subr.mxu0 0.0
  %283 = vmatpush1.msra.mxu0 0.0
  %284 = vmatprep.subr.mxu0 0.0
  %285 = vmatpush1.msra.mxu0 0.0
  %286 = vmatprep.subr.mxu0 0.0
  %287 = vmatpush1.msra.mxu0 0.0
  %288 = vmatprep.subr.mxu0 0.0
  %289 = vmatpush1.msra.mxu0 0.0
  %290 = vmatprep.subr.mxu0 0.0
  %291 = vmatpush1.msra.mxu0 0.0
  %292 = vmatprep.subr.mxu0 0.0
  %293 = vmatpush1.msra.mxu0 0.0
  %294 = vmatprep.subr.mxu0 0.0
  %295 = vmatpush1.msra.mxu0 0.0
  %296 = vmatprep.subr.mxu0 0.0
  %297 = vmatpush1.msra.mxu0 0.0
  %298 = vmatprep.subr.mxu0 0.0
  %299 = vmatpush1.msra.mxu0 0.0
  %300 = vmatprep.subr.mxu0 0.0
  %301 = vmatpush1.msra.mxu0 0.0
  %302 = vmatprep.subr.mxu0 0.0
  %303 = vmatpush1.msra.mxu0 0.0
  %304 = vmatprep.subr.mxu0 0.0
  %305 = vmatpush1.msra.mxu0 0.0
  %306 = vmatprep.subr.mxu0 0.0
  %307 = vmatpush1.msra.mxu0 0.0
  %308 = vmatprep.subr.mxu0 0.0
  %309 = vmatpush1.msra.mxu0 0.0
  %310 = vmatprep.subr.mxu0 0.0
  %311 = vmatpush1.msra.mxu0 0.0
  %312 = vmatprep.subr.mxu0 0.0
  %313 = vmatpush1.msra.mxu0 0.0
  %314 = vmatprep.subr.mxu0 0.0
  %315 = vmatpush1.msra.mxu0 0.0
  %316 = vmatprep.subr.mxu0 0.0
  %317 = vmatpush1.msra.mxu0 0.0
  %318 = vmatprep.mubr.f32.mxu0 0.0
  %319 = vmatmul.mubr.f32.gmra.mrb[0].mxu0 %v252
  %v320 = vpop.f32.mrb[0].mxu0
  %v321 = vadd.f32 0.0, %v320
  %v322 = vpop.f32.mrb[0].mxu0
  %323 = vdwg.mxu0
  %v324 = vadd.f32 %v93, %v321
  %v325 = vtanh.pop %v324
  %v327 = vsel %vm100, %v325, 0
  %329 = vmatprep.subr.mxu0 0.0
  %330 = vmatpush1.msra.mxu0 %v25
  %331 = vmatprep.subr.mxu0 0.0
  %332 = vmatpush1.msra.mxu0 %v26
  %333 = vmatprep.subr.mxu0 0.0
  %334 = vmatpush1.msra.mxu0 0.0
  %335 = vmatprep.subr.mxu0 0.0
  %336 = vmatpush1.msra.mxu0 0.0
  %337 = vmatprep.subr.mxu0 0.0
  %338 = vmatpush1.msra.mxu0 0.0
  %339 = vmatprep.subr.mxu0 0.0
  %340 = vmatpush1.msra.mxu0 0.0
  %341 = vmatprep.subr.mxu0 0.0
  %342 = vmatpush1.msra.mxu0 0.0
  %343 = vmatprep.subr.mxu0 0.0
  %344 = vmatpush1.msra.mxu0 0.0
  %345 = vmatprep.subr.mxu0 0.0
  %346 = vmatpush1.msra.mxu0 0.0
  %347 = vmatprep.subr.mxu0 0.0
  %348 = vmatpush1.msra.mxu0 0.0
  %349 = vmatprep.subr.mxu0 0.0
  %350 = vmatpush1.msra.mxu0 0.0
  %351 = vmatprep.subr.mxu0 0.0
  %352 = vmatpush1.msra.mxu0 0.0
  %353 = vmatprep.subr.mxu0 0.0
  %354 = vmatpush1.msra.mxu0 0.0
  %355 = vmatprep.subr.mxu0 0.0
  %356 = vmatpush1.msra.mxu0 0.0
  %357 = vmatprep.subr.mxu0 0.0
  %358 = vmatpush1.msra.mxu0 0.0
  %359 = vmatprep.subr.mxu0 0.0
  %360 = vmatpush1.msra.mxu0 0.0
  %361 = vmatprep.subr.mxu0 0.0
  %362 = vmatpush1.msra.mxu0 0.0
  %363 = vmatprep.subr.mxu0 0.0
  %364 = vmatpush1.msra.mxu0 0.0
  %365 = vmatprep.subr.mxu0 0.0
  %366 = vmatpush1.msra.mxu0 0.0
  %367 = vmatprep.subr.mxu0 0.0
  %368 = vmatpush1.msra.mxu0 0.0
  %369 = vmatprep.subr.mxu0 0.0
  %370 = vmatpush1.msra.mxu0 0.0
  %371 = vmatprep.subr.mxu0 0.0
  %372 = vmatpush1.msra.mxu0 0.0
  %373 = vmatprep.subr.mxu0 0.0
  %374 = vmatpush1.msra.mxu0 0.0
  %375 = vmatprep.subr.mxu0 0.0
  %376 = vmatpush1.msra.mxu0 0.0
  %377 = vmatprep.subr.mxu0 0.0
  %378 = vmatpush1.msra.mxu0 0.0
  %379 = vmatprep.subr.mxu0 0.0
  %380 = vmatpush1.msra.mxu0 0.0
  %381 = vmatprep.subr.mxu0 0.0
  %382 = vmatpush1.msra.mxu0 0.0
  %383 = vmatprep.subr.mxu0 0.0
  %384 = vmatpush1.msra.mxu0 0.0
  %385 = vmatprep.subr.mxu0 0.0
  %386 = vmatpush1.msra.mxu0 0.0
  %387 = vmatprep.subr.mxu0 0.0
  %388 = vmatpush1.msra.mxu0 0.0
  %389 = vmatprep.subr.mxu0 0.0
  %390 = vmatpush1.msra.mxu0 0.0
  %391 = vmatprep.subr.mxu0 0.0
  %392 = vmatpush1.msra.mxu0 0.0
  %393 = vmatprep.mubr.f32.mxu0 0.0
  %394 = vmatmul.mubr.f32.gmra.mrb[0].mxu0 %v327
  %v395 = vpop.f32.mrb[0].mxu0
  %v396 = vadd.f32 0.0, %v395
  %v397 = vpop.f32.mrb[0].mxu0
  %398 = vdwg.mxu0
  %v399 = vadd.f32 %v94, %v396
  %v400 = vtanh.pop %v399
  %v402 = vsel %vm100, %v400, 0
  %404 = vmatprep.subr.mxu0 0.0
  %405 = vmatpush1.msra.mxu0 %v25
  %406 = vmatprep.subr.mxu0 0.0
  %407 = vmatpush1.msra.mxu0 %v26
  %408 = vmatprep.subr.mxu0 0.0
  %409 = vmatpush1.msra.mxu0 0.0
  %410 = vmatprep.subr.mxu0 0.0
  %411 = vmatpush1.msra.mxu0 0.0
  %412 = vmatprep.subr.mxu0 0.0
  %413 = vmatpush1.msra.mxu0 0.0
  %414 = vmatprep.subr.mxu0 0.0
  %415 = vmatpush1.msra.mxu0 0.0
  %416 = vmatprep.subr.mxu0 0.0
  %417 = vmatpush1.msra.mxu0 0.0
  %418 = vmatprep.subr.mxu0 0.0
  %419 = vmatpush1.msra.mxu0 0.0
  %420 = vmatprep.subr.mxu0 0.0
  %421 = vmatpush1.msra.mxu0 0.0
  %422 = vmatprep.subr.mxu0 0.0
  %423 = vmatpush1.msra.mxu0 0.0
  %424 = vmatprep.subr.mxu0 0.0
  %425 = vmatpush1.msra.mxu0 0.0
  %426 = vmatprep.subr.mxu0 0.0
  %427 = vmatpush1.msra.mxu0 0.0
  %428 = vmatprep.subr.mxu0 0.0
  %429 = vmatpush1.msra.mxu0 0.0
  %430 = vmatprep.subr.mxu0 0.0
  %431 = vmatpush1.msra.mxu0 0.0
  %432 = vmatprep.subr.mxu0 0.0
  %433 = vmatpush1.msra.mxu0 0.0
  %434 = vmatprep.subr.mxu0 0.0
  %435 = vmatpush1.msra.mxu0 0.0
  %436 = vmatprep.subr.mxu0 0.0
  %437 = vmatpush1.msra.mxu0 0.0
  %438 = vmatprep.subr.mxu0 0.0
  %439 = vmatpush1.msra.mxu0 0.0
  %440 = vmatprep.subr.mxu0 0.0
  %441 = vmatpush1.msra.mxu0 0.0
  %442 = vmatprep.subr.mxu0 0.0
  %443 = vmatpush1.msra.mxu0 0.0
  %444 = vmatprep.subr.mxu0 0.0
  %445 = vmatpush1.msra.mxu0 0.0
  %446 = vmatprep.subr.mxu0 0.0
  %447 = vmatpush1.msra.mxu0 0.0
  %448 = vmatprep.subr.mxu0 0.0
  %449 = vmatpush1.msra.mxu0 0.0
  %450 = vmatprep.subr.mxu0 0.0
  %451 = vmatpush1.msra.mxu0 0.0
  %452 = vmatprep.subr.mxu0 0.0
  %453 = vmatpush1.msra.mxu0 0.0
  %454 = vmatprep.subr.mxu0 0.0
  %455 = vmatpush1.msra.mxu0 0.0
  %456 = vmatprep.subr.mxu0 0.0
  %457 = vmatpush1.msra.mxu0 0.0
  %458 = vmatprep.subr.mxu0 0.0
  %459 = vmatpush1.msra.mxu0 0.0
  %460 = vmatprep.subr.mxu0 0.0
  %461 = vmatpush1.msra.mxu0 0.0
  %462 = vmatprep.subr.mxu0 0.0
  %463 = vmatpush1.msra.mxu0 0.0
  %464 = vmatprep.subr.mxu0 0.0
  %465 = vmatpush1.msra.mxu0 0.0
  %466 = vmatprep.subr.mxu0 0.0
  %467 = vmatpush1.msra.mxu0 0.0
  %468 = vmatprep.mubr.f32.mxu0 0.0
  %469 = vmatmul.mubr.f32.gmra.mrb[0].mxu0 %v402
  %v470 = vpop.f32.mrb[0].mxu0
  %v471 = vadd.f32 0.0, %v470
  %v472 = vpop.f32.mrb[0].mxu0
  %473 = vdwg.mxu0
  %v474 = vadd.f32 %v95, %v471
  %v475 = vtanh.pop %v474
  %v477 = vsel %vm100, %v475, 0
  %479 = vmatprep.subr.mxu0 0.0
  %480 = vmatpush1.msra.mxu0 %v25
  %481 = vmatprep.subr.mxu0 0.0
  %482 = vmatpush1.msra.mxu0 %v26
  %483 = vmatprep.subr.mxu0 0.0
  %484 = vmatpush1.msra.mxu0 0.0
  %485 = vmatprep.subr.mxu0 0.0
  %486 = vmatpush1.msra.mxu0 0.0
  %487 = vmatprep.subr.mxu0 0.0
  %488 = vmatpush1.msra.mxu0 0.0
  %489 = vmatprep.subr.mxu0 0.0
  %490 = vmatpush1.msra.mxu0 0.0
  %491 = vmatprep.subr.mxu0 0.0
  %492 = vmatpush1.msra.mxu0 0.0
  %493 = vmatprep.subr.mxu0 0.0
  %494 = vmatpush1.msra.mxu0 0.0
  %495 = vmatprep.subr.mxu0 0.0
  %496 = vmatpush1.msra.mxu0 0.0
  %497 = vmatprep.subr.mxu0 0.0
  %498 = vmatpush1.msra.mxu0 0.0
  %499 = vmatprep.subr.mxu0 0.0
  %500 = vmatpush1.msra.mxu0 0.0
  %501 = vmatprep.subr.mxu0 0.0
  %502 = vmatpush1.msra.mxu0 0.0
  %503 = vmatprep.subr.mxu0 0.0
  %504 = vmatpush1.msra.mxu0 0.0
  %505 = vmatprep.subr.mxu0 0.0
  %506 = vmatpush1.msra.mxu0 0.0
  %507 = vmatprep.subr.mxu0 0.0
  %508 = vmatpush1.msra.mxu0 0.0
  %509 = vmatprep.subr.mxu0 0.0
  %510 = vmatpush1.msra.mxu0 0.0
  %511 = vmatprep.subr.mxu0 0.0
  %512 = vmatpush1.msra.mxu0 0.0
  %513 = vmatprep.subr.mxu0 0.0
  %514 = vmatpush1.msra.mxu0 0.0
  %515 = vmatprep.subr.mxu0 0.0
  %516 = vmatpush1.msra.mxu0 0.0
  %517 = vmatprep.subr.mxu0 0.0
  %518 = vmatpush1.msra.mxu0 0.0
  %519 = vmatprep.subr.mxu0 0.0
  %520 = vmatpush1.msra.mxu0 0.0
  %521 = vmatprep.subr.mxu0 0.0
  %522 = vmatpush1.msra.mxu0 0.0
  %523 = vmatprep.subr.mxu0 0.0
  %524 = vmatpush1.msra.mxu0 0.0
  %525 = vmatprep.subr.mxu0 0.0
  %526 = vmatpush1.msra.mxu0 0.0
  %527 = vmatprep.subr.mxu0 0.0
  %528 = vmatpush1.msra.mxu0 0.0
  %529 = vmatprep.subr.mxu0 0.0
  %530 = vmatpush1.msra.mxu0 0.0
  %531 = vmatprep.subr.mxu0 0.0
  %532 = vmatpush1.msra.mxu0 0.0
  %533 = vmatprep.subr.mxu0 0.0
  %534 = vmatpush1.msra.mxu0 0.0
  %535 = vmatprep.subr.mxu0 0.0
  %536 = vmatpush1.msra.mxu0 0.0
  %537 = vmatprep.subr.mxu0 0.0
  %538 = vmatpush1.msra.mxu0 0.0
  %539 = vmatprep.subr.mxu0 0.0
  %540 = vmatpush1.msra.mxu0 0.0
  %541 = vmatprep.subr.mxu0 0.0
  %542 = vmatpush1.msra.mxu0 0.0
  %543 = vmatprep.mubr.f32.mxu0 0.0
  %544 = vmatmul.mubr.f32.gmra.mrb[0].mxu0 %v477
  %v545 = vpop.f32.mrb[0].mxu0
  %v546 = vadd.f32 0.0, %v545
  %v547 = vpop.f32.mrb[0].mxu0
  %548 = vdwg.mxu0
  %v549 = vadd.f32 %v96, %v546
  %v550 = vtanh.pop %v549
  %v552 = vsel %vm100, %v550, 0
  %554 = vmatprep.subr.mxu0 0.0
  %555 = vmatpush1.msra.mxu0 %v25
  %556 = vmatprep.subr.mxu0 0.0
  %557 = vmatpush1.msra.mxu0 %v26
  %558 = vmatprep.subr.mxu0 0.0
  %559 = vmatpush1.msra.mxu0 0.0
  %560 = vmatprep.subr.mxu0 0.0
  %561 = vmatpush1.msra.mxu0 0.0
  %562 = vmatprep.subr.mxu0 0.0
  %563 = vmatpush1.msra.mxu0 0.0
  %564 = vmatprep.subr.mxu0 0.0
  %565 = vmatpush1.msra.mxu0 0.0
  %566 = vmatprep.subr.mxu0 0.0
  %567 = vmatpush1.msra.mxu0 0.0
  %568 = vmatprep.subr.mxu0 0.0
  %569 = vmatpush1.msra.mxu0 0.0
  %570 = vmatprep.subr.mxu0 0.0
  %571 = vmatpush1.msra.mxu0 0.0
  %572 = vmatprep.subr.mxu0 0.0
  %573 = vmatpush1.msra.mxu0 0.0
  %574 = vmatprep.subr.mxu0 0.0
  %575 = vmatpush1.msra.mxu0 0.0
  %576 = vmatprep.subr.mxu0 0.0
  %577 = vmatpush1.msra.mxu0 0.0
  %578 = vmatprep.subr.mxu0 0.0
  %579 = vmatpush1.msra.mxu0 0.0
  %580 = vmatprep.subr.mxu0 0.0
  %581 = vmatpush1.msra.mxu0 0.0
  %582 = vmatprep.subr.mxu0 0.0
  %583 = vmatpush1.msra.mxu0 0.0
  %584 = vmatprep.subr.mxu0 0.0
  %585 = vmatpush1.msra.mxu0 0.0
  %586 = vmatprep.subr.mxu0 0.0
  %587 = vmatpush1.msra.mxu0 0.0
  %588 = vmatprep.subr.mxu0 0.0
  %589 = vmatpush1.msra.mxu0 0.0
  %590 = vmatprep.subr.mxu0 0.0
  %591 = vmatpush1.msra.mxu0 0.0
  %592 = vmatprep.subr.mxu0 0.0
  %593 = vmatpush1.msra.mxu0 0.0
  %594 = vmatprep.subr.mxu0 0.0
  %595 = vmatpush1.msra.mxu0 0.0
  %596 = vmatprep.subr.mxu0 0.0
  %597 = vmatpush1.msra.mxu0 0.0
  %598 = vmatprep.subr.mxu0 0.0
  %599 = vmatpush1.msra.mxu0 0.0
  %600 = vmatprep.subr.mxu0 0.0
  %601 = vmatpush1.msra.mxu0 0.0
  %602 = vmatprep.subr.mxu0 0.0
  %603 = vmatpush1.msra.mxu0 0.0
  %604 = vmatprep.subr.mxu0 0.0
  %605 = vmatpush1.msra.mxu0 0.0
  %606 = vmatprep.subr.mxu0 0.0
  %607 = vmatpush1.msra.mxu0 0.0
  %608 = vmatprep.subr.mxu0 0.0
  %609 = vmatpush1.msra.mxu0 0.0
  %610 = vmatprep.subr.mxu0 0.0
  %611 = vmatpush1.msra.mxu0 0.0
  %612 = vmatprep.subr.mxu0 0.0
  %613 = vmatpush1.msra.mxu0 0.0
  %614 = vmatprep.subr.mxu0 0.0
  %615 = vmatpush1.msra.mxu0 0.0
  %616 = vmatprep.subr.mxu0 0.0
  %617 = vmatpush1.msra.mxu0 0.0
  %618 = vmatprep.mubr.f32.mxu0 0.0
  %619 = vmatmul.mubr.f32.gmra.mrb[0].mxu0 %v552
  %v620 = vpop.f32.mrb[0].mxu0
  %v621 = vadd.f32 0.0, %v620
  %v622 = vpop.f32.mrb[0].mxu0
  %623 = vdwg.mxu0
  %v624 = vadd.f32 %v97, %v621
  %v625 = vtanh.pop %v624
  %v627 = vsel %vm100, %v625, 0
  %629 = vmatprep.subr.mxu0 0.0
  %630 = vmatpush1.msra.mxu0 %v25
  %631 = vmatprep.subr.mxu0 0.0
  %632 = vmatpush1.msra.mxu0 %v26
  %633 = vmatprep.subr.mxu0 0.0
  %634 = vmatpush1.msra.mxu0 0.0
  %635 = vmatprep.subr.mxu0 0.0
  %636 = vmatpush1.msra.mxu0 0.0
  %637 = vmatprep.subr.mxu0 0.0
  %638 = vmatpush1.msra.mxu0 0.0
  %639 = vmatprep.subr.mxu0 0.0
  %640 = vmatpush1.msra.mxu0 0.0
  %641 = vmatprep.subr.mxu0 0.0
  %642 = vmatpush1.msra.mxu0 0.0
  %643 = vmatprep.subr.mxu0 0.0
  %644 = vmatpush1.msra.mxu0 0.0
  %645 = vmatprep.subr.mxu0 0.0
  %646 = vmatpush1.msra.mxu0 0.0
  %647 = vmatprep.subr.mxu0 0.0
  %648 = vmatpush1.msra.mxu0 0.0
  %649 = vmatprep.subr.mxu0 0.0
  %650 = vmatpush1.msra.mxu0 0.0
  %651 = vmatprep.subr.mxu0 0.0
  %652 = vmatpush1.msra.mxu0 0.0
  %653 = vmatprep.subr.mxu0 0.0
  %654 = vmatpush1.msra.mxu0 0.0
  %655 = vmatprep.subr.mxu0 0.0
  %656 = vmatpush1.msra.mxu0 0.0
  %657 = vmatprep.subr.mxu0 0.0
  %658 = vmatpush1.msra.mxu0 0.0
  %659 = vmatprep.subr.mxu0 0.0
  %660 = vmatpush1.msra.mxu0 0.0
  %661 = vmatprep.subr.mxu0 0.0
  %662 = vmatpush1.msra.mxu0 0.0
  %663 = vmatprep.subr.mxu0 0.0
  %664 = vmatpush1.msra.mxu0 0.0
  %665 = vmatprep.subr.mxu0 0.0
  %666 = vmatpush1.msra.mxu0 0.0
  %667 = vmatprep.subr.mxu0 0.0
  %668 = vmatpush1.msra.mxu0 0.0
  %669 = vmatprep.subr.mxu0 0.0
  %670 = vmatpush1.msra.mxu0 0.0
  %671 = vmatprep.subr.mxu0 0.0
  %672 = vmatpush1.msra.mxu0 0.0
  %673 = vmatprep.subr.mxu0 0.0
  %674 = vmatpush1.msra.mxu0 0.0
  %675 = vmatprep.subr.mxu0 0.0
  %676 = vmatpush1.msra.mxu0 0.0
  %677 = vmatprep.subr.mxu0 0.0
  %678 = vmatpush1.msra.mxu0 0.0
  %679 = vmatprep.subr.mxu0 0.0
  %680 = vmatpush1.msra.mxu0 0.0
  %681 = vmatprep.subr.mxu0 0.0
  %682 = vmatpush1.msra.mxu0 0.0
  %683 = vmatprep.subr.mxu0 0.0
  %684 = vmatpush1.msra.mxu0 0.0
  %685 = vmatprep.subr.mxu0 0.0
  %686 = vmatpush1.msra.mxu0 0.0
  %687 = vmatprep.subr.mxu0 0.0
  %688 = vmatpush1.msra.mxu0 0.0
  %689 = vmatprep.subr.mxu0 0.0
  %690 = vmatpush1.msra.mxu0 0.0
  %691 = vmatprep.subr.mxu0 0.0
  %692 = vmatpush1.msra.mxu0 0.0
  %693 = vmatprep.mubr.f32.mxu0 0.0
  %694 = vmatmul.mubr.f32.gmra.mrb[0].mxu0 %v627
  %v695 = vpop.f32.mrb[0].mxu0
  %v696 = vadd.f32 0.0, %v695
  %v697 = vpop.f32.mrb[0].mxu0
  %698 = vdwg.mxu0
  %v699 = vadd.f32 %v98, %v696
  %v700 = vtanh.pop %v699
  %701 = vst.msk [vmem:[%s6] sm:$0xff] %vm100, %v700
  %v703 = vsel %vm100, %v700, 0
  %705 = vmatprep.subr.mxu0 0.0
  %706 = vmatpush1.msra.mxu0 %v25
  %707 = vmatprep.subr.mxu0 0.0
  %708 = vmatpush1.msra.mxu0 %v26
  %709 = vmatprep.subr.mxu0 0.0
  %710 = vmatpush1.msra.mxu0 0.0
  %711 = vmatprep.subr.mxu0 0.0
  %712 = vmatpush1.msra.mxu0 0.0
  %713 = vmatprep.subr.mxu0 0.0
  %714 = vmatpush1.msra.mxu0 0.0
  %715 = vmatprep.subr.mxu0 0.0
  %716 = vmatpush1.msra.mxu0 0.0
  %717 = vmatprep.subr.mxu0 0.0
  %718 = vmatpush1.msra.mxu0 0.0
  %719 = vmatprep.subr.mxu0 0.0
  %720 = vmatpush1.msra.mxu0 0.0
  %721 = vmatprep.subr.mxu0 0.0
  %722 = vmatpush1.msra.mxu0 0.0
  %723 = vmatprep.subr.mxu0 0.0
  %724 = vmatpush1.msra.mxu0 0.0
  %725 = vmatprep.subr.mxu0 0.0
  %726 = vmatpush1.msra.mxu0 0.0
  %727 = vmatprep.subr.mxu0 0.0
  %728 = vmatpush1.msra.mxu0 0.0
  %729 = vmatprep.subr.mxu0 0.0
  %730 = vmatpush1.msra.mxu0 0.0
  %731 = vmatprep.subr.mxu0 0.0
  %732 = vmatpush1.msra.mxu0 0.0
  %733 = vmatprep.subr.mxu0 0.0
  %734 = vmatpush1.msra.mxu0 0.0
  %735 = vmatprep.subr.mxu0 0.0
  %736 = vmatpush1.msra.mxu0 0.0
  %737 = vmatprep.subr.mxu0 0.0
  %738 = vmatpush1.msra.mxu0 0.0
  %739 = vmatprep.subr.mxu0 0.0
  %740 = vmatpush1.msra.mxu0 0.0
  %741 = vmatprep.subr.mxu0 0.0
  %742 = vmatpush1.msra.mxu0 0.0
  %743 = vmatprep.subr.mxu0 0.0
  %744 = vmatpush1.msra.mxu0 0.0
  %745 = vmatprep.subr.mxu0 0.0
  %746 = vmatpush1.msra.mxu0 0.0
  %747 = vmatprep.subr.mxu0 0.0
  %748 = vmatpush1.msra.mxu0 0.0
  %749 = vmatprep.subr.mxu0 0.0
  %750 = vmatpush1.msra.mxu0 0.0
  %751 = vmatprep.subr.mxu0 0.0
  %752 = vmatpush1.msra.mxu0 0.0
  %753 = vmatprep.subr.mxu0 0.0
  %754 = vmatpush1.msra.mxu0 0.0
  %755 = vmatprep.subr.mxu0 0.0
  %756 = vmatpush1.msra.mxu0 0.0
  %757 = vmatprep.subr.mxu0 0.0
  %758 = vmatpush1.msra.mxu0 0.0
  %759 = vmatprep.subr.mxu0 0.0
  %760 = vmatpush1.msra.mxu0 0.0
  %761 = vmatprep.subr.mxu0 0.0
  %762 = vmatpush1.msra.mxu0 0.0
  %763 = vmatprep.subr.mxu0 0.0
  %764 = vmatpush1.msra.mxu0 0.0
  %765 = vmatprep.subr.mxu0 0.0
  %766 = vmatpush1.msra.mxu0 0.0
  %767 = vmatprep.subr.mxu0 0.0
  %768 = vmatpush1.msra.mxu0 0.0
  %769 = vmatprep.mubr.f32.mxu0 0.0
  %770 = vmatmul.mubr.f32.gmra.mrb[0].mxu0 %v703
  %v771 = vpop.f32.mrb[0].mxu0
  %v772 = vadd.f32 0.0, %v771
  %v773 = vpop.f32.mrb[0].mxu0
  %774 = vdwg.mxu0
  %776 = vrot.lane.b32.xlu0 %v246, 112
  %v777 = vpop.permute.xlu0 %776
  %780 = vrot.lane.b32.xlu0 %v321, 113
  %v781 = vpop.permute.xlu0 %780
  %784 = vrot.lane.b32.xlu0 %v396, 114
  %v785 = vpop.permute.xlu0 %784
  %788 = vrot.lane.b32.xlu0 %v471, 115
  %v789 = vpop.permute.xlu0 %788
  %792 = vrot.lane.b32.xlu0 %v546, 116
  %v793 = vpop.permute.xlu0 %792
  %796 = vrot.lane.b32.xlu0 %v621, 117
  %v797 = vpop.permute.xlu0 %796
  %800 = vrot.lane.b32.xlu0 %v696, 118
  %v801 = vpop.permute.xlu0 %800
  %804 = vrot.lane.b32.xlu0 %v772, 119
  %v805 = vpop.permute.xlu0 %804
  %vm807 = vcmask 7168
  %v808 = vsel %vm807, %v777, %v781
  %vm809 = vcmask 15360
  %v810 = vsel %vm809, %v808, %v785
  %vm811 = vcmask 23552
  %v812 = vsel %vm811, %v810, %v789
  %vm813 = vcmask 31744
  %v814 = vsel %vm813, %v812, %v793
  %vm815 = vcmask 39936
  %v816 = vsel %vm815, %v814, %v797
  %vm817 = vcmask 48128
  %v818 = vsel %vm817, %v816, %v801
  %vm819 = vcmask 56320
  %v820 = vsel %vm819, %v818, %v805
  %vm821 = vcmask 64512
  %v822 = vsel %vm821, %v820, 0.0
  %s823 = sld [smem:[#allocation2]]
  %v824 = vstv %s823
  %v825 = vadd.f32 %v822, %v824
  %826 = vst [vmem:[%s5] sm:$0xff] %v825
  // Predicated region
  $region22: #{net_forward.1} parent=0 // pred_check
    _
  $region23: #{net_forward.1} parent=0 // pred_check_branch
    %828 = sbr.rel (0) target = $region25
  $region24: #{net_forward.1} parent=0 // pred_region
    _
  $region25: #{net_forward.1} parent=0 // pred_fallthru
    _
  // Predicated region
  $region26: #{net_forward.1} parent=0 // pred_check
    _
  $region27: #{net_forward.1} parent=0 // pred_check_branch
    %830 = sbr.rel (0) target = $region29
  $region28: #{net_forward.1} parent=0 // pred_region
    _
  $region29: #{net_forward.1} parent=0 // pred_fallthru
    _
  // Predicated region
  $region30: #{net_forward.1} parent=0 // pred_check
    _
  $region31: #{net_forward.1} parent=0 // pred_check_branch
    %832 = sbr.rel (0) target = $region33
  $region32: #{net_forward.1} parent=0 // pred_region
    _
  $region33: #{net_forward.1} parent=0 // pred_fallthru
    _
  // Predicated region
  $region34: #{net_forward.1} parent=0 // pred_check
    _
  $region35: #{net_forward.1} parent=0 // pred_check_branch
    %834 = sbr.rel (0) target = $region37
  $region36: #{net_forward.1} parent=0 // pred_region
    _
  $region37: #{net_forward.1} parent=0 // pred_fallthru
    _

</llo_original>
